<compile_context>
chip_gen: v5e
topology: v5e:2x2
jax: 0.10.0
libtpu: 0.0.40
codegen_flags: <defaults>
</compile_context>

<pallas_src>
import functools

import jax
import jax.numpy as jnp
from jax.experimental import pallas as pl
from jax.experimental.pallas import tpu as pltpu

P_DROP = 0.45
DROP_THRESH = int(round(P_DROP * (2 ** 32)))      # unsigned threshold: drop if bits < T
INV_KEEP = 1.0 / (1.0 - P_DROP)
F_PAD = 128                                       # lane-padded hidden / output width
NEG_BIG = -1e30                                   # "minus infinity" for padded logits


def _round_up(x, m):
    return (x + m - 1) // m * m


def _hash_u32(x):
    """32-bit splitmix-style finalizer (pure VPU integer ops)."""
    x = x ^ (x >> jnp.uint32(16))
    x = x * jnp.uint32(0x7FEB352D)
    x = x ^ (x >> jnp.uint32(15))
    x = x * jnp.uint32(0x846CA68B)
    x = x ^ (x >> jnp.uint32(16))
    return x


def _dropout(h, seed_u32, salt, row0_u32):
    """Inverted dropout, mask from a stateless hash of (seed, salt, row, col)."""
    tb, f = h.shape
    r = jax.lax.broadcasted_iota(jnp.int32, (tb, f), 0).astype(jnp.uint32)
    c = jax.lax.broadcasted_iota(jnp.int32, (tb, f), 1).astype(jnp.uint32)
    key = (r + row0_u32) * jnp.uint32(0x9E3779B1) + c * jnp.uint32(0x85EBCA77)
    key = key ^ (seed_u32 + jnp.uint32(salt))
    bits = _hash_u32(key)
    keep = bits >= jnp.uint32(DROP_THRESH)          # P(keep) = 1 - p
    return h * jnp.where(keep, jnp.float32(INV_KEEP), jnp.float32(0.0))


def mlp_kernel(seed_ref,                                     # scalar-prefetch (SMEM)
               x_ref, w0_ref, b0_ref, w1_ref, b1_ref, w2_ref, b2_ref,
               out_ref):
    seed = seed_ref[0].astype(jnp.uint32)
    tb = x_ref.shape[0]
    row0 = (pl.program_id(0) * tb).astype(jnp.uint32)        # global row offset of tile

    # fc0 -> relu -> dropout   (MXU in bf16, accumulate/VPU math in f32)
    x = x_ref[...].astype(jnp.bfloat16)
    h0 = jnp.dot(x, w0_ref[...], preferred_element_type=jnp.float32) + b0_ref[...]
    h0 = jnp.maximum(h0, 0.0)
    h0 = _dropout(h0, seed, 0x1111, row0)

    # fc1 -> relu -> dropout
    h1 = jnp.dot(h0.astype(jnp.bfloat16), w1_ref[...],
                 preferred_element_type=jnp.float32) + b1_ref[...]
    h1 = jnp.maximum(h1, 0.0)
    h1 = _dropout(h1, seed, 0x2222, row0)

    # fc2 -> log_softmax over the lane-padded logits (padded cols biased to -1e30)
    logits = jnp.dot(h1.astype(jnp.bfloat16), w2_ref[...],
                     preferred_element_type=jnp.float32) + b2_ref[...]
    m = jnp.max(logits, axis=1, keepdims=True)
    shifted = logits - m
    lse = jnp.log(jnp.sum(jnp.exp(shifted), axis=1, keepdims=True))
    out_ref[...] = (shifted - lse).astype(out_ref.dtype)


@functools.partial(jax.jit, static_argnames=("image_size",))
def model_c_forward(x, params, seed, *, image_size):
    """x: any shape whose trailing dims flatten to image_size (e.g. NCHW)."""
    x2 = x.reshape(-1, image_size).astype(jnp.float32)
    B = x2.shape[0]
    w0, b0, w1, b1, w2, b2 = params

    # --- lane-pad params: 100/50/10 -> 128 output features; bf16 for MXU inputs ---
    d_in = image_size
    w0p = jnp.pad(w0, ((0, 0), (0, F_PAD - w0.shape[1]))).astype(jnp.bfloat16)
    b0p = jnp.pad(b0, (0, F_PAD - b0.shape[0])).reshape(1, F_PAD).astype(jnp.float32)
    w1p = jnp.pad(w1, ((0, F_PAD - w1.shape[0]), (0, F_PAD - w1.shape[1]))).astype(jnp.bfloat16)
    b1p = jnp.pad(b1, (0, F_PAD - b1.shape[0])).reshape(1, F_PAD).astype(jnp.float32)
    w2p = jnp.pad(w2, ((0, F_PAD - w2.shape[0]), (0, F_PAD - w2.shape[1]))).astype(jnp.bfloat16)
    b2p = jnp.pad(b2, (0, F_PAD - b2.shape[0]),
                  constant_values=NEG_BIG).reshape(1, F_PAD).astype(jnp.float32)

    # --- batch grid: TB rows per tile, batch padded to a multiple of TB ---
    TB = min(256, _round_up(B, 8))
    Bp = _round_up(B, TB)
    x2p = jnp.pad(x2, ((0, Bp - B), (0, 0)))
    nb = Bp // TB

    seed_arr = jnp.asarray([seed], dtype=jnp.int32)

    out_p = pl.pallas_call(
        mlp_kernel,
        out_shape=jax.ShapeDtypeStruct((Bp, F_PAD), jnp.float32),
        grid_spec=pltpu.PrefetchScalarGridSpec(
            num_scalar_prefetch=1,
            grid=(nb,),
            in_specs=[
                pl.BlockSpec((TB, d_in), lambda i, *_: (i, 0)),     # x tile
                pl.BlockSpec((d_in, F_PAD), lambda i, *_: (0, 0)),  # w0
                pl.BlockSpec((1, F_PAD), lambda i, *_: (0, 0)),     # b0
                pl.BlockSpec((F_PAD, F_PAD), lambda i, *_: (0, 0)), # w1
                pl.BlockSpec((1, F_PAD), lambda i, *_: (0, 0)),     # b1
                pl.BlockSpec((F_PAD, F_PAD), lambda i, *_: (0, 0)), # w2
                pl.BlockSpec((1, F_PAD), lambda i, *_: (0, 0)),     # b2
            ],
            out_specs=pl.BlockSpec((TB, F_PAD), lambda i, *_: (i, 0)),
        ),
        compiler_params=pltpu.CompilerParams(
            dimension_semantics=("parallel",),
            vmem_limit_bytes=32 * 1024 * 1024,
        ),
    )(seed_arr, x2p, w0p, b0p, w1p, b1p, w2p, b2p)

    return out_p[:B, :10]


def init_params(key, image_size):
    """Deterministic init matching torch.nn.Linear shapes (U[-1/sqrt(fan_in), +])."""
    dims = [(image_size, 100), (100, 50), (50, 10)]
    params = []
    for (fan_in, fan_out) in dims:
        key, kw, kb = jax.random.split(key, 3)
        bound = 1.0 / jnp.sqrt(fan_in)
        w = jax.random.uniform(kw, (fan_in, fan_out), jnp.float32, -bound, bound)
        b = jax.random.uniform(kb, (fan_out,), jnp.float32, -bound, bound)
        params += [w, b]
    return tuple(params)


if __name__ == "__main__":
    key = jax.random.PRNGKey(0)
    image_size = 8 * 8                     # small synthetic "image"
    kx, kp = jax.random.split(key)
    x = jax.random.normal(kx, (8, 1, 8, 8), dtype=jnp.float32)   # NCHW input
    params = init_params(kp, image_size)

    out = model_c_forward(x, params, seed=1234, image_size=image_size)
    out = jax.block_until_ready(out)

    assert out.shape == (8, 10)
    # log_softmax rows should (numerically) sum to ~1 after exp
    row_sums = jnp.exp(out).sum(axis=1)
    assert bool(jnp.all(jnp.abs(row_sums - 1.0) < 1e-4))
    assert bool(jnp.all(jnp.isfinite(out)))

    print("KERNEL_OK")
</pallas_src>

<mosaic_0001>
module attributes {stable_mosaic.version = 11 : i64} {
  func.func @mlp_kernel(%arg0: i32, %arg1: memref<1xi32, #tpu.memory_space<smem>>, %arg2: memref<8x64xf32, #tpu.memory_space<vmem>>, %arg3: memref<64x128xbf16, #tpu.memory_space<vmem>>, %arg4: memref<1x128xf32, #tpu.memory_space<vmem>>, %arg5: memref<128x128xbf16, #tpu.memory_space<vmem>>, %arg6: memref<1x128xf32, #tpu.memory_space<vmem>>, %arg7: memref<128x128xbf16, #tpu.memory_space<vmem>>, %arg8: memref<1x128xf32, #tpu.memory_space<vmem>>, %arg9: memref<8x128xf32, #tpu.memory_space<vmem>>) attributes {dimension_semantics = [#tpu.dimension_semantics<parallel>], iteration_bounds = array<i64: 1>, scalar_prefetch = 1 : i64, scratch_operands = 0 : i64, tpu.core_type = #tpu.core_type<tc>, window_params = [{transform_indices = @transform_0, window_bounds = array<i64: 8, 64>}, {pipeline_mode = #tpu.pipeline_mode<synchronous>, transform_indices = @transform_1, window_bounds = array<i64: 64, 128>}, {pipeline_mode = #tpu.pipeline_mode<synchronous>, transform_indices = @transform_2, window_bounds = array<i64: 1, 128>}, {pipeline_mode = #tpu.pipeline_mode<synchronous>, transform_indices = @transform_3, window_bounds = array<i64: 128, 128>}, {pipeline_mode = #tpu.pipeline_mode<synchronous>, transform_indices = @transform_4, window_bounds = array<i64: 1, 128>}, {pipeline_mode = #tpu.pipeline_mode<synchronous>, transform_indices = @transform_5, window_bounds = array<i64: 128, 128>}, {pipeline_mode = #tpu.pipeline_mode<synchronous>, transform_indices = @transform_6, window_bounds = array<i64: 1, 128>}, {transform_indices = @transform_7, window_bounds = array<i64: 8, 128>}]} {
    %c0 = arith.constant 0 : index
    %0 = memref.load %arg1[%c0] : memref<1xi32, #tpu.memory_space<smem>>
    %c8_i32 = arith.constant 8 : i32
    %1 = arith.muli %arg0, %c8_i32 : i32
    %c0_0 = arith.constant 0 : index
    %c0_1 = arith.constant 0 : index
    %2 = vector.load %arg2[%c0_0, %c0_1] : memref<8x64xf32, #tpu.memory_space<vmem>>, vector<8x64xf32>
    %3 = arith.truncf %2 : vector<8x64xf32> to vector<8x64xbf16>
    %c0_2 = arith.constant 0 : index
    %c0_3 = arith.constant 0 : index
    %4 = vector.load %arg3[%c0_2, %c0_3] : memref<64x128xbf16, #tpu.memory_space<vmem>>, vector<64x128xbf16>
    %cst = arith.constant dense<0.000000e+00> : vector<8x128xf32>
    %5 = tpu.matmul %3, %4, %cst {dimension_numbers = #tpu.dot_dimension_numbers<[1], [0], [0], [1], [0, 0, 1, 1], [], []>} : vector<8x64xbf16>, vector<64x128xbf16>, vector<8x128xf32> -> vector<8x128xf32>
    %c0_4 = arith.constant 0 : index
    %c0_5 = arith.constant 0 : index
    %6 = vector.load %arg4[%c0_4, %c0_5] : memref<1x128xf32, #tpu.memory_space<vmem>>, vector<1x128xf32>
    %7 = vector.broadcast %6 : vector<1x128xf32> to vector<8x128xf32>
    %8 = arith.addf %5, %7 : vector<8x128xf32>
    %cst_6 = arith.constant 0.000000e+00 : f32
    %9 = vector.broadcast %cst_6 : f32 to vector<8x128xf32>
    %10 = arith.maximumf %8, %9 : vector<8x128xf32>
    %11 = tpu.iota {dimensions = array<i32: 0>} : vector<8x128xi32>
    %12 = tpu.iota {dimensions = array<i32: 1>} : vector<8x128xi32>
    %13 = vector.broadcast %1 : i32 to vector<8x128xi32>
    %14 = arith.addi %11, %13 : vector<8x128xi32>
    %c-1640531535_i32 = arith.constant -1640531535 : i32
    %15 = vector.broadcast %c-1640531535_i32 : i32 to vector<8x128xi32>
    %16 = arith.muli %14, %15 : vector<8x128xi32>
    %c-2048144777_i32 = arith.constant -2048144777 : i32
    %17 = vector.broadcast %c-2048144777_i32 : i32 to vector<8x128xi32>
    %18 = arith.muli %12, %17 : vector<8x128xi32>
    %19 = arith.addi %16, %18 : vector<8x128xi32>
    %c4369_i32 = arith.constant 4369 : i32
    %20 = arith.addi %0, %c4369_i32 : i32
    %21 = vector.broadcast %20 : i32 to vector<8x128xi32>
    %22 = arith.xori %19, %21 : vector<8x128xi32>
    %c16_i32 = arith.constant 16 : i32
    %23 = vector.broadcast %c16_i32 : i32 to vector<8x128xi32>
    %24 = arith.shrui %22, %23 : vector<8x128xi32>
    %25 = arith.xori %22, %24 : vector<8x128xi32>
    %c2146121005_i32 = arith.constant 2146121005 : i32
    %26 = vector.broadcast %c2146121005_i32 : i32 to vector<8x128xi32>
    %27 = arith.muli %25, %26 : vector<8x128xi32>
    %c15_i32 = arith.constant 15 : i32
    %28 = vector.broadcast %c15_i32 : i32 to vector<8x128xi32>
    %29 = arith.shrui %27, %28 : vector<8x128xi32>
    %30 = arith.xori %27, %29 : vector<8x128xi32>
    %c-2073254261_i32 = arith.constant -2073254261 : i32
    %31 = vector.broadcast %c-2073254261_i32 : i32 to vector<8x128xi32>
    %32 = arith.muli %30, %31 : vector<8x128xi32>
    %c16_i32_7 = arith.constant 16 : i32
    %33 = vector.broadcast %c16_i32_7 : i32 to vector<8x128xi32>
    %34 = arith.shrui %32, %33 : vector<8x128xi32>
    %35 = arith.xori %32, %34 : vector<8x128xi32>
    %c1932735283_i32 = arith.constant 1932735283 : i32
    %36 = vector.broadcast %c1932735283_i32 : i32 to vector<8x128xi32>
    %37 = arith.cmpi uge, %35, %36 : vector<8x128xi32>
    %cst_8 = arith.constant 1.81818187 : f32
    %cst_9 = arith.constant 0.000000e+00 : f32
    %38 = vector.broadcast %cst_8 : f32 to vector<8x128xf32>
    %39 = vector.broadcast %cst_9 : f32 to vector<8x128xf32>
    %40 = arith.select %37, %38, %39 : vector<8x128xi1>, vector<8x128xf32>
    %41 = arith.mulf %10, %40 : vector<8x128xf32>
    %42 = arith.truncf %41 : vector<8x128xf32> to vector<8x128xbf16>
    %c0_10 = arith.constant 0 : index
    %c0_11 = arith.constant 0 : index
    %43 = vector.load %arg5[%c0_10, %c0_11] : memref<128x128xbf16, #tpu.memory_space<vmem>>, vector<128x128xbf16>
    %cst_12 = arith.constant dense<0.000000e+00> : vector<8x128xf32>
    %44 = tpu.matmul %42, %43, %cst_12 {dimension_numbers = #tpu.dot_dimension_numbers<[1], [0], [0], [1], [0, 0, 1, 1], [], []>} : vector<8x128xbf16>, vector<128x128xbf16>, vector<8x128xf32> -> vector<8x128xf32>
    %c0_13 = arith.constant 0 : index
    %c0_14 = arith.constant 0 : index
    %45 = vector.load %arg6[%c0_13, %c0_14] : memref<1x128xf32, #tpu.memory_space<vmem>>, vector<1x128xf32>
    %46 = vector.broadcast %45 : vector<1x128xf32> to vector<8x128xf32>
    %47 = arith.addf %44, %46 : vector<8x128xf32>
    %cst_15 = arith.constant 0.000000e+00 : f32
    %48 = vector.broadcast %cst_15 : f32 to vector<8x128xf32>
    %49 = arith.maximumf %47, %48 : vector<8x128xf32>
    %50 = tpu.iota {dimensions = array<i32: 0>} : vector<8x128xi32>
    %51 = tpu.iota {dimensions = array<i32: 1>} : vector<8x128xi32>
    %52 = vector.broadcast %1 : i32 to vector<8x128xi32>
    %53 = arith.addi %50, %52 : vector<8x128xi32>
    %c-1640531535_i32_16 = arith.constant -1640531535 : i32
    %54 = vector.broadcast %c-1640531535_i32_16 : i32 to vector<8x128xi32>
    %55 = arith.muli %53, %54 : vector<8x128xi32>
    %c-2048144777_i32_17 = arith.constant -2048144777 : i32
    %56 = vector.broadcast %c-2048144777_i32_17 : i32 to vector<8x128xi32>
    %57 = arith.muli %51, %56 : vector<8x128xi32>
    %58 = arith.addi %55, %57 : vector<8x128xi32>
    %c8738_i32 = arith.constant 8738 : i32
    %59 = arith.addi %0, %c8738_i32 : i32
    %60 = vector.broadcast %59 : i32 to vector<8x128xi32>
    %61 = arith.xori %58, %60 : vector<8x128xi32>
    %c16_i32_18 = arith.constant 16 : i32
    %62 = vector.broadcast %c16_i32_18 : i32 to vector<8x128xi32>
    %63 = arith.shrui %61, %62 : vector<8x128xi32>
    %64 = arith.xori %61, %63 : vector<8x128xi32>
    %c2146121005_i32_19 = arith.constant 2146121005 : i32
    %65 = vector.broadcast %c2146121005_i32_19 : i32 to vector<8x128xi32>
    %66 = arith.muli %64, %65 : vector<8x128xi32>
    %c15_i32_20 = arith.constant 15 : i32
    %67 = vector.broadcast %c15_i32_20 : i32 to vector<8x128xi32>
    %68 = arith.shrui %66, %67 : vector<8x128xi32>
    %69 = arith.xori %66, %68 : vector<8x128xi32>
    %c-2073254261_i32_21 = arith.constant -2073254261 : i32
    %70 = vector.broadcast %c-2073254261_i32_21 : i32 to vector<8x128xi32>
    %71 = arith.muli %69, %70 : vector<8x128xi32>
    %c16_i32_22 = arith.constant 16 : i32
    %72 = vector.broadcast %c16_i32_22 : i32 to vector<8x128xi32>
    %73 = arith.shrui %71, %72 : vector<8x128xi32>
    %74 = arith.xori %71, %73 : vector<8x128xi32>
    %c1932735283_i32_23 = arith.constant 1932735283 : i32
    %75 = vector.broadcast %c1932735283_i32_23 : i32 to vector<8x128xi32>
    %76 = arith.cmpi uge, %74, %75 : vector<8x128xi32>
    %cst_24 = arith.constant 1.81818187 : f32
    %cst_25 = arith.constant 0.000000e+00 : f32
    %77 = vector.broadcast %cst_24 : f32 to vector<8x128xf32>
    %78 = vector.broadcast %cst_25 : f32 to vector<8x128xf32>
    %79 = arith.select %76, %77, %78 : vector<8x128xi1>, vector<8x128xf32>
    %80 = arith.mulf %49, %79 : vector<8x128xf32>
    %81 = arith.truncf %80 : vector<8x128xf32> to vector<8x128xbf16>
    %c0_26 = arith.constant 0 : index
    %c0_27 = arith.constant 0 : index
    %82 = vector.load %arg7[%c0_26, %c0_27] : memref<128x128xbf16, #tpu.memory_space<vmem>>, vector<128x128xbf16>
    %cst_28 = arith.constant dense<0.000000e+00> : vector<8x128xf32>
    %83 = tpu.matmul %81, %82, %cst_28 {dimension_numbers = #tpu.dot_dimension_numbers<[1], [0], [0], [1], [0, 0, 1, 1], [], []>} : vector<8x128xbf16>, vector<128x128xbf16>, vector<8x128xf32> -> vector<8x128xf32>
    %c0_29 = arith.constant 0 : index
    %c0_30 = arith.constant 0 : index
    %84 = vector.load %arg8[%c0_29, %c0_30] : memref<1x128xf32, #tpu.memory_space<vmem>>, vector<1x128xf32>
    %85 = vector.broadcast %84 : vector<1x128xf32> to vector<8x128xf32>
    %86 = arith.addf %83, %85 : vector<8x128xf32>
    %cst_31 = arith.constant dense<0xFF800000> : vector<8xf32>
    %87 = vector.multi_reduction <maximumf>, %86, %cst_31 [1] : vector<8x128xf32> to vector<8xf32>
    %88 = vector.shape_cast %87 : vector<8xf32> to vector<8x1xf32>
    %89 = vector.broadcast %88 : vector<8x1xf32> to vector<8x128xf32>
    %90 = arith.subf %86, %89 : vector<8x128xf32>
    %91 = math.exp %90 : vector<8x128xf32>
    %cst_32 = arith.constant dense<0.000000e+00> : vector<8xf32>
    %92 = vector.multi_reduction <add>, %91, %cst_32 [1] : vector<8x128xf32> to vector<8xf32>
    %93 = vector.shape_cast %92 : vector<8xf32> to vector<8x1xf32>
    %94 = math.log %93 : vector<8x1xf32>
    %95 = vector.broadcast %94 : vector<8x1xf32> to vector<8x128xf32>
    %96 = arith.subf %90, %95 : vector<8x128xf32>
    %c0_33 = arith.constant 0 : index
    %c0_34 = arith.constant 0 : index
    %97 = vector.load %arg9[%c0_33, %c0_34] : memref<8x128xf32, #tpu.memory_space<vmem>>, vector<8x128xf32>
    tpu.vector_store %arg9[%c0_33, %c0_34], %96 {strides = array<i32>} : memref<8x128xf32, #tpu.memory_space<vmem>>, vector<8x128xf32>,
    return
  }
  func.func @transform_0(%arg0: i32, %arg1: memref<1xi32, #tpu.memory_space<smem>>) -> (i32, i32) {
    %c0_i32 = arith.constant 0 : i32
    %c0_i32_0 = arith.constant 0 : i32
    return %arg0, %c0_i32 : i32, i32
  }
  func.func @transform_1(%arg0: i32, %arg1: memref<1xi32, #tpu.memory_space<smem>>) -> (i32, i32) {
    %c0_i32 = arith.constant 0 : i32
    %c0_i32_0 = arith.constant 0 : i32
    %c0_i32_1 = arith.constant 0 : i32
    return %c0_i32, %c0_i32_0 : i32, i32
  }
  func.func @transform_2(%arg0: i32, %arg1: memref<1xi32, #tpu.memory_space<smem>>) -> (i32, i32) {
    %c0_i32 = arith.constant 0 : i32
    %c0_i32_0 = arith.constant 0 : i32
    %c0_i32_1 = arith.constant 0 : i32
    return %c0_i32, %c0_i32_0 : i32, i32
  }
  func.func @transform_3(%arg0: i32, %arg1: memref<1xi32, #tpu.memory_space<smem>>) -> (i32, i32) {
    %c0_i32 = arith.constant 0 : i32
    %c0_i32_0 = arith.constant 0 : i32
    %c0_i32_1 = arith.constant 0 : i32
    return %c0_i32, %c0_i32_0 : i32, i32
  }
  func.func @transform_4(%arg0: i32, %arg1: memref<1xi32, #tpu.memory_space<smem>>) -> (i32, i32) {
    %c0_i32 = arith.constant 0 : i32
    %c0_i32_0 = arith.constant 0 : i32
    %c0_i32_1 = arith.constant 0 : i32
    return %c0_i32, %c0_i32_0 : i32, i32
  }
  func.func @transform_5(%arg0: i32, %arg1: memref<1xi32, #tpu.memory_space<smem>>) -> (i32, i32) {
    %c0_i32 = arith.constant 0 : i32
    %c0_i32_0 = arith.constant 0 : i32
    %c0_i32_1 = arith.constant 0 : i32
    return %c0_i32, %c0_i32_0 : i32, i32
  }
  func.func @transform_6(%arg0: i32, %arg1: memref<1xi32, #tpu.memory_space<smem>>) -> (i32, i32) {
    %c0_i32 = arith.constant 0 : i32
    %c0_i32_0 = arith.constant 0 : i32
    %c0_i32_1 = arith.constant 0 : i32
    return %c0_i32, %c0_i32_0 : i32, i32
  }
  func.func @transform_7(%arg0: i32, %arg1: memref<1xi32, #tpu.memory_space<smem>>) -> (i32, i32) {
    %c0_i32 = arith.constant 0 : i32
    %c0_i32_0 = arith.constant 0 : i32
    return %arg0, %c0_i32 : i32, i32
  }
}

</mosaic_0001>

<llo_original>
// kernel: model_c_forward.1
$region0: #{model_c_forward.1}
  #allocation0 [shape = 'u32[]', space=smem, size = 0x4, offset = 0x4, fixed_abs, tag = 'smem constant byte address 0x4 - core index']
  #allocation1 [shape = 'u32[72,128]{1,0:T(1,128)}', space=vmem, size = 0x9000, scoped, tag = 'internal scratch']
  #allocation2 [shape = 's32[1]{0}', space=sflag, size = 0x4, scoped, tag = 'scoped memory for model_c_forward.1']
  #allocation3 [shape = 's32[1]{0:T(128)S(6)}', space=smem, size = 0x200, scoped, tag = 'prefetched SMEM operand 0']
  %s0 = inlined_call_operand.<no memory space> [shape: s32[1], index: 0, kind: input, shape index: {}]
  %s1 = inlined_call_operand.vmem [shape: f32[8,64], index: 1, kind: input, shape index: {}]
  %s2 = inlined_call_operand.vmem [shape: bf16[64,128], index: 2, kind: input, shape index: {}]
  %s3 = inlined_call_operand.vmem [shape: f32[1,128], index: 3, kind: input, shape index: {}]
  %s4 = inlined_call_operand.vmem [shape: bf16[128,128], index: 4, kind: input, shape index: {}]
  %s5 = inlined_call_operand.vmem [shape: f32[1,128], index: 5, kind: input, shape index: {}]
  %s6 = inlined_call_operand.vmem [shape: bf16[128,128], index: 6, kind: input, shape index: {}]
  %s7 = inlined_call_operand.vmem [shape: f32[1,128], index: 7, kind: input, shape index: {}]
  %s8 = inlined_call_operand.hbm [shape: f32[8,128], index: 8, kind: output, shape index: {}]
  %s9 = sld [smem:[#allocation0]]
  $region38: #{model_c_forward.1} parent=0
    _
  %s11 = ssub.s32 1, %s9
  %s12 = scalar_select 0, %s11, %s9
  %13 = sst [smem:[#allocation3]] %s0
  $region1: #{model_c_forward.1} parent=0
    #allocation4 [shape = 'u8[4096]{0}', space=vmem, size = 0x1000, scoped, tag = 'output window, operand 0, single buffered']
    #allocation5 [shape = 's32[1]{0}', space=sflag, size = 0x4, scoped, tag = 'scoped memory for model_c_forward.1']
    %14 = vsyncpa [#allocation5], 0
    // Predicated region
    $region2: #{model_c_forward.1} parent=1 // pred_check
      _
    $region3: #{model_c_forward.1} parent=1 // pred_check_branch
      %16 = sbr.rel (0) target = $region5
    $region4: #{model_c_forward.1} parent=1 // pred_region
      _
    $region5: #{model_c_forward.1} parent=1 // pred_fallthru
      _
    // Predicated region
    $region6: #{model_c_forward.1} parent=1 // pred_check
      _
    $region7: #{model_c_forward.1} parent=1 // pred_check_branch
      %18 = sbr.rel (0) target = $region9
    $region8: #{model_c_forward.1} parent=1 // pred_region
      _
    $region9: #{model_c_forward.1} parent=1 // pred_fallthru
      _
    // Predicated region
    $region10: #{model_c_forward.1} parent=1 // pred_check
      _
    $region11: #{model_c_forward.1} parent=1 // pred_check_branch
      %20 = sbr.rel (0) target = $region13
    $region12: #{model_c_forward.1} parent=1 // pred_region
      _
    $region13: #{model_c_forward.1} parent=1 // pred_fallthru
      _
    // Predicated region
    $region14: #{model_c_forward.1} parent=1 // pred_check
      _
    $region15: #{model_c_forward.1} parent=1 // pred_check_branch
      %22 = sbr.rel (0) target = $region17
    $region16: #{model_c_forward.1} parent=1 // pred_region
      _
    $region17: #{model_c_forward.1} parent=1 // pred_fallthru
      _
    // Predicated region
    $region18: #{model_c_forward.1} parent=1 // pred_check
      _
    $region19: #{model_c_forward.1} parent=1 // pred_check_branch
      %24 = sbr.rel (0) target = $region21
    $region20: #{model_c_forward.1} parent=1 // pred_region
      _
    $region21: #{model_c_forward.1} parent=1 // pred_fallthru
      _
    // Predicated region
    $region22: #{model_c_forward.1} parent=1 // pred_check
      _
    $region23: #{model_c_forward.1} parent=1 // pred_check_branch
      %26 = sbr.rel (0) target = $region25
    $region24: #{model_c_forward.1} parent=1 // pred_region
      _
    $region25: #{model_c_forward.1} parent=1 // pred_fallthru
      _
    // Predicated region
    $region26: #{model_c_forward.1} parent=1 // pred_check
      _
    $region27: #{model_c_forward.1} parent=1 // pred_check_branch
      %28 = sbr.rel (0) target = $region29
    $region28: #{model_c_forward.1} parent=1 // pred_region
      _
    $region29: #{model_c_forward.1} parent=1 // pred_fallthru
      _
    %s30 = sld [smem:[#allocation3]]
    %s31 = smul.u32 0, 8
    %v32 = vld [vmem:[%s1] sm:$0xff]
    %v33 = vpack.c.bf16 %v32, %v32
    %v34 = vld [vmem:[%s2] sm:$0xf]
    %v35 = vld [vmem:[%s2 + $0x4] sm:$0xf]
    %v36 = vld [vmem:[%s2 + $0x8] sm:$0xf]
    %v37 = vld [vmem:[%s2 + $0xc] sm:$0xf]
    %v38 = vld [vmem:[%s2 + $0x10] sm:$0xf]
    %v39 = vld [vmem:[%s2 + $0x14] sm:$0xf]
    %v40 = vld [vmem:[%s2 + $0x18] sm:$0xf]
    %v41 = vld [vmem:[%s2 + $0x1c] sm:$0xf]
    %v42 = vld [vmem:[%s3] sm:$0x1]
    %v44 = vperm.slane %v42, 0
    %v54 = vunpack.c.l.b16 %v34
    %v55 = vunpack.c.l.b16 %v35
    %v56 = vunpack.c.l.b16 %v36
    %v57 = vunpack.c.l.b16 %v37
    %v58 = vunpack.c.l.b16 %v38
    %v59 = vunpack.c.l.b16 %v39
    %v60 = vunpack.c.l.b16 %v40
    %v61 = vunpack.c.l.b16 %v41
    %v62 = vpack.c.b16 %v55, %v54
    %v63 = vpack.c.b16 %v57, %v56
    %v64 = vpack.c.b16 %v59, %v58
    %v65 = vpack.c.b16 %v61, %v60
    %vm70 = vcmask 523264
    %v72 = vsel %vm70, %v33, 0
    %74 = vmatpush.bf16.msra.mxu0 0
    %75 = vmatpush.bf16.msra.mxu0 0
    %76 = vmatpush.bf16.msra.mxu0 0
    %77 = vmatpush.bf16.msra.mxu0 0
    %78 = vmatpush.bf16.msra.mxu0 %v65
    %79 = vmatpush.bf16.msra.mxu0 %v64
    %80 = vmatpush.bf16.msra.mxu0 %v63
    %81 = vmatpush.bf16.msra.mxu0 %v62
    %82 = vmatmul.bf16.gmra.mxu0 %v72
    %v83 = vpop.f32.mrf.mxu0
    %v84 = vadd.f32 %v44, %v83
    %v85 = vpop.f32.mrf.mxu0
    %86 = vdwg.mxu0
    %v87 = vmax.f32 %v84, 0.0
    %v88 = vlaneseq
    %v89 = vshrl.u32 %v88, 7
    %v90 = vlaneseq
    %v91 = vand.u32 %v90, 127
    %v92 = vstv %s31
    %v93 = vadd.s32 %v89, %v92
    %v94 = vmul.u32 %v93, 2654435761
    %v95 = vmul.u32 %v91, 2246822519
    %v96 = vadd.s32 %v94, %v95
    %s97 = sadd.s32 %s30, 4369
    %v98 = vstv %s97
    %v99 = vxor.u32 %v96, %v98
    %v100 = vshrl.u32 %v99, 16
    %v101 = vxor.u32 %v99, %v100
    %v102 = vmul.u32 %v101, 2146121005
    %v103 = vshrl.u32 %v102, 15
    %v104 = vxor.u32 %v102, %v103
    %v105 = vmul.u32 %v104, 2221713035
    %v106 = vshrl.u32 %v105, 16
    %v107 = vxor.u32 %v105, %v106
    %v108 = vadd.s32 %v107, 2147483648
    %vm110 = vcmp.ge.s32.totalorder %v108, 4080218931
    %v111 = vsel %vm110, 1.8181819, 0.0
    %v112 = vmul.f32 %v87, %v111
    %v113 = vpack.c.bf16 %v112, %v112
    %v114 = vld [vmem:[%s4] sm:$0xf]
    %v115 = vld [vmem:[%s4 + $0x4] sm:$0xf]
    %v116 = vld [vmem:[%s4 + $0x8] sm:$0xf]
    %v117 = vld [vmem:[%s4 + $0xc] sm:$0xf]
    %v118 = vld [vmem:[%s4 + $0x10] sm:$0xf]
    %v119 = vld [vmem:[%s4 + $0x14] sm:$0xf]
    %v120 = vld [vmem:[%s4 + $0x18] sm:$0xf]
    %v121 = vld [vmem:[%s4 + $0x1c] sm:$0xf]
    %v122 = vld [vmem:[%s4 + $0x20] sm:$0xf]
    %v123 = vld [vmem:[%s4 + $0x24] sm:$0xf]
    %v124 = vld [vmem:[%s4 + $0x28] sm:$0xf]
    %v125 = vld [vmem:[%s4 + $0x2c] sm:$0xf]
    %v126 = vld [vmem:[%s4 + $0x30] sm:$0xf]
    %v127 = vld [vmem:[%s4 + $0x34] sm:$0xf]
    %v128 = vld [vmem:[%s4 + $0x38] sm:$0xf]
    %v129 = vld [vmem:[%s4 + $0x3c] sm:$0xf]
    %v130 = vld [vmem:[%s5] sm:$0x1]
    %v132 = vperm.slane %v130, 0
    %v150 = vunpack.c.l.b16 %v114
    %v151 = vunpack.c.l.b16 %v115
    %v152 = vunpack.c.l.b16 %v116
    %v153 = vunpack.c.l.b16 %v117
    %v154 = vunpack.c.l.b16 %v118
    %v155 = vunpack.c.l.b16 %v119
    %v156 = vunpack.c.l.b16 %v120
    %v157 = vunpack.c.l.b16 %v121
    %v158 = vunpack.c.l.b16 %v122
    %v159 = vunpack.c.l.b16 %v123
    %v160 = vunpack.c.l.b16 %v124
    %v161 = vunpack.c.l.b16 %v125
    %v162 = vunpack.c.l.b16 %v126
    %v163 = vunpack.c.l.b16 %v127
    %v164 = vunpack.c.l.b16 %v128
    %v165 = vunpack.c.l.b16 %v129
    %v166 = vpack.c.b16 %v151, %v150
    %v167 = vpack.c.b16 %v153, %v152
    %v168 = vpack.c.b16 %v155, %v154
    %v169 = vpack.c.b16 %v157, %v156
    %v170 = vpack.c.b16 %v159, %v158
    %v171 = vpack.c.b16 %v161, %v160
    %v172 = vpack.c.b16 %v163, %v162
    %v173 = vpack.c.b16 %v165, %v164
    %182 = vmatpush.bf16.msra.mxu0 %v173
    %183 = vmatpush.bf16.msra.mxu0 %v172
    %184 = vmatpush.bf16.msra.mxu0 %v171
    %185 = vmatpush.bf16.msra.mxu0 %v170
    %186 = vmatpush.bf16.msra.mxu0 %v169
    %187 = vmatpush.bf16.msra.mxu0 %v168
    %188 = vmatpush.bf16.msra.mxu0 %v167
    %189 = vmatpush.bf16.msra.mxu0 %v166
    %190 = vmatmul.bf16.gmra.mxu0 %v113
    %v191 = vpop.f32.mrf.mxu0
    %v192 = vadd.f32 %v132, %v191
    %v193 = vpop.f32.mrf.mxu0
    %194 = vdwg.mxu0
    %v195 = vmax.f32 %v192, 0.0
    %s196 = sadd.s32 %s30, 8738
    %v197 = vstv %s196
    %v198 = vxor.u32 %v96, %v197
    %v199 = vshrl.u32 %v198, 16
    %v200 = vxor.u32 %v198, %v199
    %v201 = vmul.u32 %v200, 2146121005
    %v202 = vshrl.u32 %v201, 15
    %v203 = vxor.u32 %v201, %v202
    %v204 = vmul.u32 %v203, 2221713035
    %v205 = vshrl.u32 %v204, 16
    %v206 = vxor.u32 %v204, %v205
    %v207 = vadd.s32 %v206, 2147483648
    %vm209 = vcmp.ge.s32.totalorder %v207, 4080218931
    %v210 = vsel %vm209, 1.8181819, 0.0
    %v211 = vmul.f32 %v195, %v210
    %v212 = vpack.c.bf16 %v211, %v211
    %v213 = vld [vmem:[%s6] sm:$0xf]
    %v214 = vld [vmem:[%s6 + $0x4] sm:$0xf]
    %v215 = vld [vmem:[%s6 + $0x8] sm:$0xf]
    %v216 = vld [vmem:[%s6 + $0xc] sm:$0xf]
    %v217 = vld [vmem:[%s6 + $0x10] sm:$0xf]
    %v218 = vld [vmem:[%s6 + $0x14] sm:$0xf]
    %v219 = vld [vmem:[%s6 + $0x18] sm:$0xf]
    %v220 = vld [vmem:[%s6 + $0x1c] sm:$0xf]
    %v221 = vld [vmem:[%s6 + $0x20] sm:$0xf]
    %v222 = vld [vmem:[%s6 + $0x24] sm:$0xf]
    %v223 = vld [vmem:[%s6 + $0x28] sm:$0xf]
    %v224 = vld [vmem:[%s6 + $0x2c] sm:$0xf]
    %v225 = vld [vmem:[%s6 + $0x30] sm:$0xf]
    %v226 = vld [vmem:[%s6 + $0x34] sm:$0xf]
    %v227 = vld [vmem:[%s6 + $0x38] sm:$0xf]
    %v228 = vld [vmem:[%s6 + $0x3c] sm:$0xf]
    %v229 = vld [vmem:[%s7] sm:$0x1]
    %v231 = vperm.slane %v229, 0
    %v249 = vunpack.c.l.b16 %v213
    %v250 = vunpack.c.l.b16 %v214
    %v251 = vunpack.c.l.b16 %v215
    %v252 = vunpack.c.l.b16 %v216
    %v253 = vunpack.c.l.b16 %v217
    %v254 = vunpack.c.l.b16 %v218
    %v255 = vunpack.c.l.b16 %v219
    %v256 = vunpack.c.l.b16 %v220
    %v257 = vunpack.c.l.b16 %v221
    %v258 = vunpack.c.l.b16 %v222
    %v259 = vunpack.c.l.b16 %v223
    %v260 = vunpack.c.l.b16 %v224
    %v261 = vunpack.c.l.b16 %v225
    %v262 = vunpack.c.l.b16 %v226
    %v263 = vunpack.c.l.b16 %v227
    %v264 = vunpack.c.l.b16 %v228
    %v265 = vpack.c.b16 %v250, %v249
    %v266 = vpack.c.b16 %v252, %v251
    %v267 = vpack.c.b16 %v254, %v253
    %v268 = vpack.c.b16 %v256, %v255
    %v269 = vpack.c.b16 %v258, %v257
    %v270 = vpack.c.b16 %v260, %v259
    %v271 = vpack.c.b16 %v262, %v261
    %v272 = vpack.c.b16 %v264, %v263
    %281 = vmatpush.bf16.msra.mxu0 %v272
    %282 = vmatpush.bf16.msra.mxu0 %v271
    %283 = vmatpush.bf16.msra.mxu0 %v270
    %284 = vmatpush.bf16.msra.mxu0 %v269
    %285 = vmatpush.bf16.msra.mxu0 %v268
    %286 = vmatpush.bf16.msra.mxu0 %v267
    %287 = vmatpush.bf16.msra.mxu0 %v266
    %288 = vmatpush.bf16.msra.mxu0 %v265
    %289 = vmatmul.bf16.gmra.mxu0 %v212
    %v290 = vpop.f32.mrf.mxu0
    %v291 = vadd.f32 %v231, %v290
    %v292 = vpop.f32.mrf.mxu0
    %293 = vdwg.mxu0
    %294 = vmax.xlane.f32.xlu0 %v291
    %v295 = vpop.xlane.xlu0 %294
    %v296 = vsub.f32 %v291, %v295
    %v297 = vmul.f32 %v296, 1.442695
    %v298 = vpow.pop %v297
    %299 = vadd.xlane.f32.xlu0 %v298
    %v300 = vpop.xlane.xlu0 %299
    %v301 = vlog2.pop %v300
    %v302 = vmul.f32 %v301, 0.6931472
    %v303 = vsub.f32 %v296, %v302
    %304 = vst [vmem:[#allocation4] sm:$0xff] %v303
    // Predicated region
    $region30: #{model_c_forward.1} parent=1 // pred_check
      _
    $region31: #{model_c_forward.1} parent=1 // pred_check_branch
      %306 = sbr.rel (0) target = $region33
    $region32: #{model_c_forward.1} parent=1 // pred_region
      %308 = vsyncadd [#allocation5], 0
      %s310 = sshll.u32 [#allocation4], 4
      %s311 = int_to_ptr.vmem [resolvable:$true] %s310
      %s312 = sshll.u32 %s8, 4
      %s313 = int_to_ptr.hbm [resolvable:$true] %s312
      %315 = dma.vmem_to_hbm [thread:$0]  %s311, 128, %s313, [#allocation5]
    $region33: #{model_c_forward.1} parent=1 // pred_fallthru
      _
    // Predicated region
    $region34: #{model_c_forward.1} parent=1 // pred_check
      _
    $region35: #{model_c_forward.1} parent=1 // pred_check_branch
      %317 = sbr.rel (0) target = $region37
    $region36: #{model_c_forward.1} parent=1 // pred_region
      %319 = dma.done [#allocation5], 128
    $region37: #{model_c_forward.1} parent=1 // pred_fallthru
      _
    %320 = vsyncpa [#allocation5], 1

</llo_original>
